<compile_context>
chip_gen: v7x
topology: tpu7x:2x2x1
jax: 0.10.0
libtpu: 0.0.40
codegen_flags: <defaults>
</compile_context>

<pallas_src>
import functools

import jax
import jax.numpy as jnp
from jax.experimental import pallas as pl
from jax.experimental.pallas import tpu as pltpu


def _round_up(x, m):
    return ((x + m - 1) // m) * m


def _cdiv(a, b):
    return -(-a // b)


def _projection_head(x_bf16, w_ref, b_ref, g_ref, beta_ref):
    """nn.Linear -> nn.GELU (erf) -> nn.LayerNorm -> F.normalize(dim=1).

    MXU matmul in bf16 with f32 accumulation; all VPU/EUP math in f32.
    """
    h = jnp.dot(x_bf16, w_ref[...], preferred_element_type=jnp.float32) + b_ref[...]
    # exact erf-form GELU
    h = 0.5 * h * (1.0 + jax.lax.erf(h * 0.7071067811865476))
    # LayerNorm(proj_dim), eps=1e-5 -- two-pass (centered) moments
    inv_p = 1.0 / h.shape[-1]
    mu = jnp.sum(h, axis=-1, keepdims=True) * inv_p
    d = h - mu
    var = jnp.sum(d * d, axis=-1, keepdims=True) * inv_p
    h = d * jax.lax.rsqrt(var + 1e-5) * g_ref[...] + beta_ref[...]
    # F.normalize(dim=1), eps=1e-12 -- single EUP rsqrt, no full-tile divide
    inv_n = jax.lax.rsqrt(jnp.maximum(jnp.sum(h * h, axis=-1, keepdims=True), 1e-24))
    return h * inv_n


def _text_head_kernel(txt_ref, wt_ref, bt_ref, gt_ref, betat_ref, out_ref):
    """One-shot: normalized text features for the whole (row-padded) batch."""
    out_ref[...] = _projection_head(txt_ref[...], wt_ref, bt_ref, gt_ref, betat_ref)


def _img_sim_kernel(pat_ref, wi_ref, bi_ref, gi_ref, betai_ref, ftT_ref, out_ref):
    """One image row tile: image head + bf16 similarity matmul vs resident text slab."""
    fi = _projection_head(pat_ref[...], wi_ref, bi_ref, gi_ref, betai_ref)  # [TB, P] f32
    # logit scale is already folded into ftT; bf16 x bf16 -> f32 on the MXU.
    out_ref[...] = jnp.dot(fi.astype(ftT_ref.dtype), ftT_ref[...],
                           preferred_element_type=jnp.float32)


def clip_forward(images, captions, params, *, row_tile=256):
    """images: f32 [B, C, H, W] (NCHW); captions: i32 [B, S]."""
    B, C, H, W = images.shape
    patch = params["patch"]

    # --- glue: non-overlapping patches + mean pool (vision stand-in front end) ---
    x = images.reshape(B, C, H // patch, patch, W // patch, patch)
    x = x.transpose(0, 2, 4, 1, 3, 5)                       # [B, nh, nw, C, p, p]
    patches = x.reshape(B, -1, C * patch * patch)           # [B, n_patches, patch_dim]
    pooled = jnp.mean(patches, axis=1)                      # [B, patch_dim]

    # --- glue: token-embedding lookup + mean pool (text stand-in front end) ---
    txt = jnp.mean(jnp.take(params["tok_emb"], captions, axis=0), axis=1)  # [B, text_dim]

    patch_dim = pooled.shape[1]
    text_dim = txt.shape[1]
    proj_dim = params["wi"].shape[1]
    assert proj_dim % 128 == 0, "projection_dim must be a multiple of 128"

    # --- fuse the (purely linear) patch embedding with the image projection Linear:
    #     (pooled @ wp + bp) @ wi + bi  ==  pooled @ (wp@wi) + (bp@wi + bi)
    w_img = jnp.dot(params["wp"], params["wi"])                   # [patch_dim, P]
    b_img = jnp.dot(params["bp"], params["wi"]) + params["bi"]    # [1, P]

    # --- padding policy ---
    #   image rows: only to the row tile (multiple of 8), NOT 128
    #   text rows (similarity lane dim): to 128 for unmasked vst
    #   contraction dims: full unpadded extent (block == array dim), 8-aligned
    b8 = _round_up(B, 8)
    nsteps = _cdiv(b8, row_tile)
    tb = _round_up(_cdiv(b8, nsteps), 8)
    b_img_pad = nsteps * tb
    col_pad = _round_up(B, 128)
    k_img = _round_up(patch_dim, 8)
    k_txt = _round_up(text_dim, 8)

    pooled_p = jnp.pad(pooled, ((0, b_img_pad - B), (0, k_img - patch_dim))
                       ).astype(jnp.bfloat16)
    txt_p = jnp.pad(txt, ((0, b8 - B), (0, k_txt - text_dim))).astype(jnp.bfloat16)
    w_img_p = jnp.pad(w_img, ((0, k_img - patch_dim), (0, 0))).astype(jnp.bfloat16)
    w_txt_p = jnp.pad(params["wt"], ((0, k_txt - text_dim), (0, 0))).astype(jnp.bfloat16)

    const = lambda i: (0, 0)

    # --- hoisted text head: computed exactly once ---
    ft = pl.pallas_call(
        _text_head_kernel,
        out_shape=jax.ShapeDtypeStruct((b8, proj_dim), jnp.float32),
        grid=(1,),
        in_specs=[
            pl.BlockSpec((b8, k_txt), const),
            pl.BlockSpec((k_txt, proj_dim), const),
            pl.BlockSpec((1, proj_dim), const),
            pl.BlockSpec((1, proj_dim), const),
            pl.BlockSpec((1, proj_dim), const),
        ],
        out_specs=pl.BlockSpec((b8, proj_dim), const),
        compiler_params=pltpu.CompilerParams(dimension_semantics=("arbitrary",)),
    )(txt_p, w_txt_p, params["bt"], params["gt"], params["betat"])

    # fold exp(logit_scale) into the text features (once), cast to bf16, and
    # present them pre-transposed + lane-dense: [proj_dim, col_pad]
    scale = jnp.exp(params["logit_scale"]).reshape(1, 1)
    ftT = jnp.pad((ft * scale).astype(jnp.bfloat16),
                  ((0, col_pad - b8), (0, 0))).T                 # [P, col_pad]

    # --- batch-gridded image head + similarity matmul ---
    sim = pl.pallas_call(
        _img_sim_kernel,
        out_shape=jax.ShapeDtypeStruct((b_img_pad, col_pad), jnp.float32),
        grid=(b_img_pad // tb,),
        in_specs=[
            pl.BlockSpec((tb, k_img), lambda i: (i, 0)),         # pooled patches (tiled)
            pl.BlockSpec((k_img, proj_dim), const),              # fused image weight (bf16)
            pl.BlockSpec((1, proj_dim), const),                  # fused image bias
            pl.BlockSpec((1, proj_dim), const),                  # image LN gamma
            pl.BlockSpec((1, proj_dim), const),                  # image LN beta
            pl.BlockSpec((proj_dim, col_pad), const),            # scaled text slab (resident)
        ],
        out_specs=pl.BlockSpec((tb, col_pad), lambda i: (i, 0)),  # lane-dense output tile
        compiler_params=pltpu.CompilerParams(
            dimension_semantics=("parallel",)),
    )(pooled_p, w_img_p, b_img, params["gi"], params["betai"], ftT)

    return sim[:B, :B]


def _xavier_uniform(key, shape):
    fan_in, fan_out = shape[0], shape[1]
    limit = (6.0 / (fan_in + fan_out)) ** 0.5
    return jax.random.uniform(key, shape, jnp.float32, -limit, limit)


def init_params(key, patch_dim, vision_dim, text_dim, proj_dim, vocab, patch):
    ks = jax.random.split(key, 4)
    return {
        "patch": patch,
        # vision stand-in: patch embedding
        "wp": _xavier_uniform(ks[0], (patch_dim, vision_dim)),
        "bp": jnp.zeros((1, vision_dim), jnp.float32),
        # text stand-in: token embedding (xavier per _init_weights for nn.Embedding)
        "tok_emb": _xavier_uniform(ks[1], (vocab, text_dim)),
        # image projection: Linear + GELU + LayerNorm
        "wi": _xavier_uniform(ks[2], (vision_dim, proj_dim)),
        "bi": jnp.zeros((1, proj_dim), jnp.float32),
        "gi": jnp.ones((1, proj_dim), jnp.float32),
        "betai": jnp.zeros((1, proj_dim), jnp.float32),
        # text projection: Linear + GELU + LayerNorm
        "wt": _xavier_uniform(ks[3], (text_dim, proj_dim)),
        "bt": jnp.zeros((1, proj_dim), jnp.float32),
        "gt": jnp.ones((1, proj_dim), jnp.float32),
        "betat": jnp.zeros((1, proj_dim), jnp.float32),
        # logit_scale parameter (exp taken in the wrapper, as in forward())
        "logit_scale": jnp.full((1,), 2.6592, jnp.float32),
    }


if __name__ == "__main__":
    B, C, H, W = 8, 3, 16, 16
    SEQ, VOCAB = 8, 100
    PATCH = 8
    VISION_DIM, TEXT_DIM, PROJ_DIM = 32, 32, 128
    PATCH_DIM = C * PATCH * PATCH

    key = jax.random.PRNGKey(0)
    k_img, k_cap, k_par = jax.random.split(key, 3)

    images = jax.random.normal(k_img, (B, C, H, W), jnp.float32)      # NCHW
    captions = jax.random.randint(k_cap, (B, SEQ), 0, VOCAB, jnp.int32)
    params = init_params(k_par, PATCH_DIM, VISION_DIM, TEXT_DIM, PROJ_DIM, VOCAB, PATCH)

    sim = jax.jit(functools.partial(clip_forward, params=params))(images, captions)
    sim = jax.block_until_ready(sim)

    assert sim.shape == (B, B)
    assert bool(jnp.all(jnp.isfinite(sim)))
    print("KERNEL_OK")
</pallas_src>

<mosaic_0001>
module attributes {stable_mosaic.version = 11 : i64} {
  func.func @_text_head_kernel(%arg0: i32, %arg1: memref<8x32xbf16, #tpu.memory_space<vmem>>, %arg2: memref<32x128xbf16, #tpu.memory_space<vmem>>, %arg3: memref<1x128xf32, #tpu.memory_space<vmem>>, %arg4: memref<1x128xf32, #tpu.memory_space<vmem>>, %arg5: memref<1x128xf32, #tpu.memory_space<vmem>>, %arg6: memref<8x128xf32, #tpu.memory_space<vmem>>) attributes {dimension_semantics = [#tpu.dimension_semantics<arbitrary>], iteration_bounds = array<i64: 1>, scalar_prefetch = 0 : i64, scratch_operands = 0 : i64, tpu.core_type = #tpu.core_type<tc>, window_params = [{pipeline_mode = #tpu.pipeline_mode<synchronous>, transform_indices = @transform_0, window_bounds = array<i64: 8, 32>}, {pipeline_mode = #tpu.pipeline_mode<synchronous>, transform_indices = @transform_1, window_bounds = array<i64: 32, 128>}, {pipeline_mode = #tpu.pipeline_mode<synchronous>, transform_indices = @transform_2, window_bounds = array<i64: 1, 128>}, {pipeline_mode = #tpu.pipeline_mode<synchronous>, transform_indices = @transform_3, window_bounds = array<i64: 1, 128>}, {pipeline_mode = #tpu.pipeline_mode<synchronous>, transform_indices = @transform_4, window_bounds = array<i64: 1, 128>}, {pipeline_mode = #tpu.pipeline_mode<synchronous>, transform_indices = @transform_5, window_bounds = array<i64: 8, 128>}]} {
    %c0 = arith.constant 0 : index
    %c0_0 = arith.constant 0 : index
    %0 = vector.load %arg1[%c0, %c0_0] : memref<8x32xbf16, #tpu.memory_space<vmem>>, vector<8x32xbf16>
    %c0_1 = arith.constant 0 : index
    %c0_2 = arith.constant 0 : index
    %1 = vector.load %arg2[%c0_1, %c0_2] : memref<32x128xbf16, #tpu.memory_space<vmem>>, vector<32x128xbf16>
    %cst = arith.constant dense<0.000000e+00> : vector<8x128xf32>
    %2 = tpu.matmul %0, %1, %cst {dimension_numbers = #tpu.dot_dimension_numbers<[1], [0], [0], [1], [0, 0, 1, 1], [], []>} : vector<8x32xbf16>, vector<32x128xbf16>, vector<8x128xf32> -> vector<8x128xf32>
    %c0_3 = arith.constant 0 : index
    %c0_4 = arith.constant 0 : index
    %3 = vector.load %arg3[%c0_3, %c0_4] : memref<1x128xf32, #tpu.memory_space<vmem>>, vector<1x128xf32>
    %4 = vector.broadcast %3 : vector<1x128xf32> to vector<8x128xf32>
    %5 = arith.addf %2, %4 : vector<8x128xf32>
    %cst_5 = arith.constant 5.000000e-01 : f32
    %6 = vector.broadcast %cst_5 : f32 to vector<8x128xf32>
    %7 = arith.mulf %6, %5 : vector<8x128xf32>
    %cst_6 = arith.constant 0.707106769 : f32
    %8 = vector.broadcast %cst_6 : f32 to vector<8x128xf32>
    %9 = arith.mulf %5, %8 : vector<8x128xf32>
    %10 = math.erf %9 : vector<8x128xf32>
    %cst_7 = arith.constant 1.000000e+00 : f32
    %11 = vector.broadcast %cst_7 : f32 to vector<8x128xf32>
    %12 = arith.addf %11, %10 : vector<8x128xf32>
    %13 = arith.mulf %7, %12 : vector<8x128xf32>
    %cst_8 = arith.constant dense<0.000000e+00> : vector<8xf32>
    %14 = vector.multi_reduction <add>, %13, %cst_8 [1] : vector<8x128xf32> to vector<8xf32>
    %15 = vector.shape_cast %14 : vector<8xf32> to vector<8x1xf32>
    %cst_9 = arith.constant 7.812500e-03 : f32
    %16 = vector.broadcast %cst_9 : f32 to vector<8x1xf32>
    %17 = arith.mulf %15, %16 : vector<8x1xf32>
    %18 = vector.broadcast %17 : vector<8x1xf32> to vector<8x128xf32>
    %19 = arith.subf %13, %18 : vector<8x128xf32>
    %20 = arith.mulf %19, %19 : vector<8x128xf32>
    %cst_10 = arith.constant dense<0.000000e+00> : vector<8xf32>
    %21 = vector.multi_reduction <add>, %20, %cst_10 [1] : vector<8x128xf32> to vector<8xf32>
    %22 = vector.shape_cast %21 : vector<8xf32> to vector<8x1xf32>
    %cst_11 = arith.constant 7.812500e-03 : f32
    %23 = vector.broadcast %cst_11 : f32 to vector<8x1xf32>
    %24 = arith.mulf %22, %23 : vector<8x1xf32>
    %cst_12 = arith.constant 9.99999974E-6 : f32
    %25 = vector.broadcast %cst_12 : f32 to vector<8x1xf32>
    %26 = arith.addf %24, %25 : vector<8x1xf32>
    %27 = math.rsqrt %26 : vector<8x1xf32>
    %28 = vector.broadcast %27 : vector<8x1xf32> to vector<8x128xf32>
    %29 = arith.mulf %19, %28 : vector<8x128xf32>
    %c0_13 = arith.constant 0 : index
    %c0_14 = arith.constant 0 : index
    %30 = vector.load %arg4[%c0_13, %c0_14] : memref<1x128xf32, #tpu.memory_space<vmem>>, vector<1x128xf32>
    %31 = vector.broadcast %30 : vector<1x128xf32> to vector<8x128xf32>
    %32 = arith.mulf %29, %31 : vector<8x128xf32>
    %c0_15 = arith.constant 0 : index
    %c0_16 = arith.constant 0 : index
    %33 = vector.load %arg5[%c0_15, %c0_16] : memref<1x128xf32, #tpu.memory_space<vmem>>, vector<1x128xf32>
    %34 = vector.broadcast %33 : vector<1x128xf32> to vector<8x128xf32>
    %35 = arith.addf %32, %34 : vector<8x128xf32>
    %36 = arith.mulf %35, %35 : vector<8x128xf32>
    %cst_17 = arith.constant dense<0.000000e+00> : vector<8xf32>
    %37 = vector.multi_reduction <add>, %36, %cst_17 [1] : vector<8x128xf32> to vector<8xf32>
    %38 = vector.shape_cast %37 : vector<8xf32> to vector<8x1xf32>
    %cst_18 = arith.constant 1.000000e-24 : f32
    %39 = vector.broadcast %cst_18 : f32 to vector<8x1xf32>
    %40 = arith.maximumf %38, %39 : vector<8x1xf32>
    %41 = math.rsqrt %40 : vector<8x1xf32>
    %42 = vector.broadcast %41 : vector<8x1xf32> to vector<8x128xf32>
    %43 = arith.mulf %35, %42 : vector<8x128xf32>
    %c0_19 = arith.constant 0 : index
    %c0_20 = arith.constant 0 : index
    %44 = vector.load %arg6[%c0_19, %c0_20] : memref<8x128xf32, #tpu.memory_space<vmem>>, vector<8x128xf32>
    tpu.vector_store %arg6[%c0_19, %c0_20], %43 {strides = array<i32>} : memref<8x128xf32, #tpu.memory_space<vmem>>, vector<8x128xf32>,
    return
  }
  func.func @transform_0(%arg0: i32) -> (i32, i32) {
    %c0_i32 = arith.constant 0 : i32
    %c0_i32_0 = arith.constant 0 : i32
    %c0_i32_1 = arith.constant 0 : i32
    return %c0_i32, %c0_i32_0 : i32, i32
  }
  func.func @transform_1(%arg0: i32) -> (i32, i32) {
    %c0_i32 = arith.constant 0 : i32
    %c0_i32_0 = arith.constant 0 : i32
    %c0_i32_1 = arith.constant 0 : i32
    return %c0_i32, %c0_i32_0 : i32, i32
  }
  func.func @transform_2(%arg0: i32) -> (i32, i32) {
    %c0_i32 = arith.constant 0 : i32
    %c0_i32_0 = arith.constant 0 : i32
    %c0_i32_1 = arith.constant 0 : i32
    return %c0_i32, %c0_i32_0 : i32, i32
  }
  func.func @transform_3(%arg0: i32) -> (i32, i32) {
    %c0_i32 = arith.constant 0 : i32
    %c0_i32_0 = arith.constant 0 : i32
    %c0_i32_1 = arith.constant 0 : i32
    return %c0_i32, %c0_i32_0 : i32, i32
  }
  func.func @transform_4(%arg0: i32) -> (i32, i32) {
    %c0_i32 = arith.constant 0 : i32
    %c0_i32_0 = arith.constant 0 : i32
    %c0_i32_1 = arith.constant 0 : i32
    return %c0_i32, %c0_i32_0 : i32, i32
  }
  func.func @transform_5(%arg0: i32) -> (i32, i32) {
    %c0_i32 = arith.constant 0 : i32
    %c0_i32_0 = arith.constant 0 : i32
    %c0_i32_1 = arith.constant 0 : i32
    return %c0_i32, %c0_i32_0 : i32, i32
  }
}

module attributes {stable_mosaic.version = 11 : i64} {
  func.func @_img_sim_kernel(%arg0: i32, %arg1: memref<8x192xbf16, #tpu.memory_space<vmem>>, %arg2: memref<192x128xbf16, #tpu.memory_space<vmem>>, %arg3: memref<1x128xf32, #tpu.memory_space<vmem>>, %arg4: memref<1x128xf32, #tpu.memory_space<vmem>>, %arg5: memref<1x128xf32, #tpu.memory_space<vmem>>, %arg6: memref<128x128xbf16, #tpu.memory_space<vmem>>, %arg7: memref<8x128xf32, #tpu.memory_space<vmem>>) attributes {dimension_semantics = [#tpu.dimension_semantics<parallel>], iteration_bounds = array<i64: 1>, scalar_prefetch = 0 : i64, scratch_operands = 0 : i64, tpu.core_type = #tpu.core_type<tc>, window_params = [{transform_indices = @transform_0, window_bounds = array<i64: 8, 192>}, {pipeline_mode = #tpu.pipeline_mode<synchronous>, transform_indices = @transform_1, window_bounds = array<i64: 192, 128>}, {pipeline_mode = #tpu.pipeline_mode<synchronous>, transform_indices = @transform_2, window_bounds = array<i64: 1, 128>}, {pipeline_mode = #tpu.pipeline_mode<synchronous>, transform_indices = @transform_3, window_bounds = array<i64: 1, 128>}, {pipeline_mode = #tpu.pipeline_mode<synchronous>, transform_indices = @transform_4, window_bounds = array<i64: 1, 128>}, {pipeline_mode = #tpu.pipeline_mode<synchronous>, transform_indices = @transform_5, window_bounds = array<i64: 128, 128>}, {transform_indices = @transform_6, window_bounds = array<i64: 8, 128>}]} {
    %c0 = arith.constant 0 : index
    %c0_0 = arith.constant 0 : index
    %0 = vector.load %arg1[%c0, %c0_0] : memref<8x192xbf16, #tpu.memory_space<vmem>>, vector<8x192xbf16>
    %c0_1 = arith.constant 0 : index
    %c0_2 = arith.constant 0 : index
    %1 = vector.load %arg2[%c0_1, %c0_2] : memref<192x128xbf16, #tpu.memory_space<vmem>>, vector<192x128xbf16>
    %cst = arith.constant dense<0.000000e+00> : vector<8x128xf32>
    %2 = tpu.matmul %0, %1, %cst {dimension_numbers = #tpu.dot_dimension_numbers<[1], [0], [0], [1], [0, 0, 1, 1], [], []>} : vector<8x192xbf16>, vector<192x128xbf16>, vector<8x128xf32> -> vector<8x128xf32>
    %c0_3 = arith.constant 0 : index
    %c0_4 = arith.constant 0 : index
    %3 = vector.load %arg3[%c0_3, %c0_4] : memref<1x128xf32, #tpu.memory_space<vmem>>, vector<1x128xf32>
    %4 = vector.broadcast %3 : vector<1x128xf32> to vector<8x128xf32>
    %5 = arith.addf %2, %4 : vector<8x128xf32>
    %cst_5 = arith.constant 5.000000e-01 : f32
    %6 = vector.broadcast %cst_5 : f32 to vector<8x128xf32>
    %7 = arith.mulf %6, %5 : vector<8x128xf32>
    %cst_6 = arith.constant 0.707106769 : f32
    %8 = vector.broadcast %cst_6 : f32 to vector<8x128xf32>
    %9 = arith.mulf %5, %8 : vector<8x128xf32>
    %10 = math.erf %9 : vector<8x128xf32>
    %cst_7 = arith.constant 1.000000e+00 : f32
    %11 = vector.broadcast %cst_7 : f32 to vector<8x128xf32>
    %12 = arith.addf %11, %10 : vector<8x128xf32>
    %13 = arith.mulf %7, %12 : vector<8x128xf32>
    %cst_8 = arith.constant dense<0.000000e+00> : vector<8xf32>
    %14 = vector.multi_reduction <add>, %13, %cst_8 [1] : vector<8x128xf32> to vector<8xf32>
    %15 = vector.shape_cast %14 : vector<8xf32> to vector<8x1xf32>
    %cst_9 = arith.constant 7.812500e-03 : f32
    %16 = vector.broadcast %cst_9 : f32 to vector<8x1xf32>
    %17 = arith.mulf %15, %16 : vector<8x1xf32>
    %18 = vector.broadcast %17 : vector<8x1xf32> to vector<8x128xf32>
    %19 = arith.subf %13, %18 : vector<8x128xf32>
    %20 = arith.mulf %19, %19 : vector<8x128xf32>
    %cst_10 = arith.constant dense<0.000000e+00> : vector<8xf32>
    %21 = vector.multi_reduction <add>, %20, %cst_10 [1] : vector<8x128xf32> to vector<8xf32>
    %22 = vector.shape_cast %21 : vector<8xf32> to vector<8x1xf32>
    %cst_11 = arith.constant 7.812500e-03 : f32
    %23 = vector.broadcast %cst_11 : f32 to vector<8x1xf32>
    %24 = arith.mulf %22, %23 : vector<8x1xf32>
    %cst_12 = arith.constant 9.99999974E-6 : f32
    %25 = vector.broadcast %cst_12 : f32 to vector<8x1xf32>
    %26 = arith.addf %24, %25 : vector<8x1xf32>
    %27 = math.rsqrt %26 : vector<8x1xf32>
    %28 = vector.broadcast %27 : vector<8x1xf32> to vector<8x128xf32>
    %29 = arith.mulf %19, %28 : vector<8x128xf32>
    %c0_13 = arith.constant 0 : index
    %c0_14 = arith.constant 0 : index
    %30 = vector.load %arg4[%c0_13, %c0_14] : memref<1x128xf32, #tpu.memory_space<vmem>>, vector<1x128xf32>
    %31 = vector.broadcast %30 : vector<1x128xf32> to vector<8x128xf32>
    %32 = arith.mulf %29, %31 : vector<8x128xf32>
    %c0_15 = arith.constant 0 : index
    %c0_16 = arith.constant 0 : index
    %33 = vector.load %arg5[%c0_15, %c0_16] : memref<1x128xf32, #tpu.memory_space<vmem>>, vector<1x128xf32>
    %34 = vector.broadcast %33 : vector<1x128xf32> to vector<8x128xf32>
    %35 = arith.addf %32, %34 : vector<8x128xf32>
    %36 = arith.mulf %35, %35 : vector<8x128xf32>
    %cst_17 = arith.constant dense<0.000000e+00> : vector<8xf32>
    %37 = vector.multi_reduction <add>, %36, %cst_17 [1] : vector<8x128xf32> to vector<8xf32>
    %38 = vector.shape_cast %37 : vector<8xf32> to vector<8x1xf32>
    %cst_18 = arith.constant 1.000000e-24 : f32
    %39 = vector.broadcast %cst_18 : f32 to vector<8x1xf32>
    %40 = arith.maximumf %38, %39 : vector<8x1xf32>
    %41 = math.rsqrt %40 : vector<8x1xf32>
    %42 = vector.broadcast %41 : vector<8x1xf32> to vector<8x128xf32>
    %43 = arith.mulf %35, %42 : vector<8x128xf32>
    %44 = arith.truncf %43 : vector<8x128xf32> to vector<8x128xbf16>
    %c0_19 = arith.constant 0 : index
    %c0_20 = arith.constant 0 : index
    %45 = vector.load %arg6[%c0_19, %c0_20] : memref<128x128xbf16, #tpu.memory_space<vmem>>, vector<128x128xbf16>
    %cst_21 = arith.constant dense<0.000000e+00> : vector<8x128xf32>
    %46 = tpu.matmul %44, %45, %cst_21 {dimension_numbers = #tpu.dot_dimension_numbers<[1], [0], [0], [1], [0, 0, 1, 1], [], []>} : vector<8x128xbf16>, vector<128x128xbf16>, vector<8x128xf32> -> vector<8x128xf32>
    %c0_22 = arith.constant 0 : index
    %c0_23 = arith.constant 0 : index
    %47 = vector.load %arg7[%c0_22, %c0_23] : memref<8x128xf32, #tpu.memory_space<vmem>>, vector<8x128xf32>
    tpu.vector_store %arg7[%c0_22, %c0_23], %46 {strides = array<i32>} : memref<8x128xf32, #tpu.memory_space<vmem>>, vector<8x128xf32>,
    return
  }
  func.func @transform_0(%arg0: i32) -> (i32, i32) {
    %c0_i32 = arith.constant 0 : i32
    %c0_i32_0 = arith.constant 0 : i32
    return %arg0, %c0_i32 : i32, i32
  }
  func.func @transform_1(%arg0: i32) -> (i32, i32) {
    %c0_i32 = arith.constant 0 : i32
    %c0_i32_0 = arith.constant 0 : i32
    %c0_i32_1 = arith.constant 0 : i32
    return %c0_i32, %c0_i32_0 : i32, i32
  }
  func.func @transform_2(%arg0: i32) -> (i32, i32) {
    %c0_i32 = arith.constant 0 : i32
    %c0_i32_0 = arith.constant 0 : i32
    %c0_i32_1 = arith.constant 0 : i32
    return %c0_i32, %c0_i32_0 : i32, i32
  }
  func.func @transform_3(%arg0: i32) -> (i32, i32) {
    %c0_i32 = arith.constant 0 : i32
    %c0_i32_0 = arith.constant 0 : i32
    %c0_i32_1 = arith.constant 0 : i32
    return %c0_i32, %c0_i32_0 : i32, i32
  }
  func.func @transform_4(%arg0: i32) -> (i32, i32) {
    %c0_i32 = arith.constant 0 : i32
    %c0_i32_0 = arith.constant 0 : i32
    %c0_i32_1 = arith.constant 0 : i32
    return %c0_i32, %c0_i32_0 : i32, i32
  }
  func.func @transform_5(%arg0: i32) -> (i32, i32) {
    %c0_i32 = arith.constant 0 : i32
    %c0_i32_0 = arith.constant 0 : i32
    %c0_i32_1 = arith.constant 0 : i32
    return %c0_i32, %c0_i32_0 : i32, i32
  }
  func.func @transform_6(%arg0: i32) -> (i32, i32) {
    %c0_i32 = arith.constant 0 : i32
    %c0_i32_0 = arith.constant 0 : i32
    return %arg0, %c0_i32 : i32, i32
  }
}

</mosaic_0001>

<llo_original>
// kernel: clip_forward.2
$region0: #{clip_forward.2}
  #allocation0 [shape = 'u32[]', space=smem, size = 0x4, offset = 0x4, fixed_abs, tag = 'smem constant byte address 0x4 - core index']
  #allocation1 [shape = 'u32[144,128]{1,0:T(1,128)}', space=vmem, size = 0x12000, scoped, tag = 'internal scratch']
  %s0 = inlined_call_operand.vmem [shape: bf16[8,32], index: 0, kind: input, shape index: {}]
  %s1 = inlined_call_operand.vmem [shape: bf16[32,128], index: 1, kind: input, shape index: {}]
  %s2 = inlined_call_operand.vmem [shape: f32[1,128], index: 2, kind: input, shape index: {}, may-alias: {2,4}]
  %s3 = inlined_call_operand.vmem [shape: f32[1,128], index: 3, kind: input, shape index: {}]
  %s4 = inlined_call_operand.vmem [shape: f32[1,128], index: 4, kind: input, shape index: {}, may-alias: {2,4}]
  %s5 = inlined_call_operand.vmem [shape: f32[8,128], index: 5, kind: output, shape index: {}]
  %s6 = sld [smem:[#allocation0]]
  $region30: #{clip_forward.2} parent=0
    _
  %s8 = ssub.s32 1, %s6
  %s9 = scalar_select 0, %s8, %s6
  // Predicated region
  $region2: #{clip_forward.2} parent=0 // pred_check
    _
  $region3: #{clip_forward.2} parent=0 // pred_check_branch
    %11 = sbr.rel (0) target = $region5
  $region4: #{clip_forward.2} parent=0 // pred_region
    _
  $region5: #{clip_forward.2} parent=0 // pred_fallthru
    _
  // Predicated region
  $region6: #{clip_forward.2} parent=0 // pred_check
    _
  $region7: #{clip_forward.2} parent=0 // pred_check_branch
    %13 = sbr.rel (0) target = $region9
  $region8: #{clip_forward.2} parent=0 // pred_region
    _
  $region9: #{clip_forward.2} parent=0 // pred_fallthru
    _
  // Predicated region
  $region10: #{clip_forward.2} parent=0 // pred_check
    _
  $region11: #{clip_forward.2} parent=0 // pred_check_branch
    %15 = sbr.rel (0) target = $region13
  $region12: #{clip_forward.2} parent=0 // pred_region
    _
  $region13: #{clip_forward.2} parent=0 // pred_fallthru
    _
  // Predicated region
  $region14: #{clip_forward.2} parent=0 // pred_check
    _
  $region15: #{clip_forward.2} parent=0 // pred_check_branch
    %17 = sbr.rel (0) target = $region17
  $region16: #{clip_forward.2} parent=0 // pred_region
    _
  $region17: #{clip_forward.2} parent=0 // pred_fallthru
    _
  // Predicated region
  $region18: #{clip_forward.2} parent=0 // pred_check
    _
  $region19: #{clip_forward.2} parent=0 // pred_check_branch
    %19 = sbr.rel (0) target = $region21
  $region20: #{clip_forward.2} parent=0 // pred_region
    _
  $region21: #{clip_forward.2} parent=0 // pred_fallthru
    _
  %v21 = vld [vmem:[%s0] sm:$0xf]
  %v22 = vld [vmem:[%s1] sm:$0xf]
  %v23 = vld [vmem:[%s1 + $0x4] sm:$0xf]
  %v24 = vld [vmem:[%s1 + $0x8] sm:$0xf]
  %v25 = vld [vmem:[%s1 + $0xc] sm:$0xf]
  %v26 = vld [vmem:[%s2] sm:$0x1]
  %v28 = vlaneseq
  %v29 = vshrl.u32 %v28, 7
  %v30 = vsub.s32 0, %v29
  %v31 = vrot.slane %v26, %v30
  %v37 = vunpack.c.l.b16 %v22
  %v38 = vunpack.c.l.b16 %v23
  %v39 = vunpack.c.l.b16 %v24
  %v40 = vunpack.c.l.b16 %v25
  %v41 = vpack.c.b16 %v38, %v37
  %v42 = vpack.c.b16 %v40, %v39
  %vm45 = vcmask 261120
  %v47 = vsel %vm45, %v21, 0
  %49 = vmatprep.subr.bf16.mxu0 0
  %50 = vmatpush1.bf16.msra.mxu0 %v41
  %51 = vmatprep.subr.bf16.mxu0 0
  %52 = vmatpush1.bf16.msra.mxu0 %v42
  %53 = vmatprep.subr.bf16.mxu0 0
  %54 = vmatpush1.bf16.msra.mxu0 0
  %55 = vmatprep.subr.bf16.mxu0 0
  %56 = vmatpush1.bf16.msra.mxu0 0
  %57 = vmatprep.subr.bf16.mxu0 0
  %58 = vmatpush1.bf16.msra.mxu0 0
  %59 = vmatprep.subr.bf16.mxu0 0
  %60 = vmatpush1.bf16.msra.mxu0 0
  %61 = vmatprep.subr.bf16.mxu0 0
  %62 = vmatpush1.bf16.msra.mxu0 0
  %63 = vmatprep.subr.bf16.mxu0 0
  %64 = vmatpush1.bf16.msra.mxu0 0
  %65 = vmatprep.subr.bf16.mxu0 0
  %66 = vmatpush1.bf16.msra.mxu0 0
  %67 = vmatprep.subr.bf16.mxu0 0
  %68 = vmatpush1.bf16.msra.mxu0 0
  %69 = vmatprep.subr.bf16.mxu0 0
  %70 = vmatpush1.bf16.msra.mxu0 0
  %71 = vmatprep.subr.bf16.mxu0 0
  %72 = vmatpush1.bf16.msra.mxu0 0
  %73 = vmatprep.subr.bf16.mxu0 0
  %74 = vmatpush1.bf16.msra.mxu0 0
  %75 = vmatprep.subr.bf16.mxu0 0
  %76 = vmatpush1.bf16.msra.mxu0 0
  %77 = vmatprep.subr.bf16.mxu0 0
  %78 = vmatpush1.bf16.msra.mxu0 0
  %79 = vmatprep.subr.bf16.mxu0 0
  %80 = vmatpush1.bf16.msra.mxu0 0
  %81 = vmatprep.mubr.bf16.mxu0 0
  %82 = vmatmul.mubr.bf16.gmra.mrb[0].mxu0 %v47
  %v83 = vpop.f32.mrb[0].mxu0
  %v84 = vadd.f32 %v31, %v83
  %v85 = vpop.f32.mrb[0].mxu0
  %v86 = vpop.f32.mrb[0].mxu0
  %v87 = vpop.f32.mrb[0].mxu0
  %88 = vdwg.mxu0
  %v89 = vmul.f32 %v84, 0.5
  %v90 = vmul.f32 %v84, 0.70710677
  %v91 = verf.f32.pop %v90
  %v92 = vadd.f32 %v91, 1.0
  %v93 = vmul.f32 %v89, %v92
  %94 = vadd.xlane.f32.xlu0 %v93
  %v95 = vpop.xlane.xlu0 %94
  %v96 = vmul.f32 %v95, 0.0078125
  %v97 = vsub.f32 %v93, %v96
  %v98 = vmul.f32 %v97, %v97
  %99 = vadd.xlane.f32.xlu0 %v98
  %v100 = vpop.xlane.xlu0 %99
  %v101 = vmul.f32 %v100, 0.0078125
  %v102 = vadd.f32 %v101, 1e-05
  %v103 = vrsqrt.pop %v102
  %v104 = vmul.f32 %v97, %v103
  %v105 = vld [vmem:[%s3] sm:$0x1]
  %v107 = vlaneseq
  %v108 = vshrl.u32 %v107, 7
  %v109 = vsub.s32 0, %v108
  %v110 = vrot.slane %v105, %v109
  %v112 = vmul.f32 %v104, %v110
  %v113 = vld [vmem:[%s4] sm:$0x1]
  %v115 = vlaneseq
  %v116 = vshrl.u32 %v115, 7
  %v117 = vsub.s32 0, %v116
  %v118 = vrot.slane %v113, %v117
  %v120 = vadd.f32 %v112, %v118
  %v121 = vmul.f32 %v120, %v120
  %122 = vadd.xlane.f32.xlu0 %v121
  %v123 = vpop.xlane.xlu0 %122
  %v124 = vmax.f32 %v123, 1e-24
  %v125 = vrsqrt.pop %v124
  %v126 = vmul.f32 %v120, %v125
  %127 = vst [vmem:[%s5] sm:$0xff] %v126
  // Predicated region
  $region22: #{clip_forward.2} parent=0 // pred_check
    _
  $region23: #{clip_forward.2} parent=0 // pred_check_branch
    %129 = sbr.rel (0) target = $region25
  $region24: #{clip_forward.2} parent=0 // pred_region
    _
  $region25: #{clip_forward.2} parent=0 // pred_fallthru
    _
  // Predicated region
  $region26: #{clip_forward.2} parent=0 // pred_check
    _
  $region27: #{clip_forward.2} parent=0 // pred_check_branch
    %131 = sbr.rel (0) target = $region29
  $region28: #{clip_forward.2} parent=0 // pred_region
    _
  $region29: #{clip_forward.2} parent=0 // pred_fallthru
    _

// kernel: clip_forward.3
$region0: #{clip_forward.3}
  #allocation0 [shape = 'u32[]', space=smem, size = 0x4, offset = 0x4, fixed_abs, tag = 'smem constant byte address 0x4 - core index']
  #allocation1 [shape = 'u32[144,128]{1,0:T(1,128)}', space=vmem, size = 0x12000, scoped, tag = 'internal scratch']
  %s0 = inlined_call_operand.vmem [shape: bf16[8,192], index: 0, kind: input, shape index: {}]
  %s1 = inlined_call_operand.vmem [shape: bf16[192,128], index: 1, kind: input, shape index: {}]
  %s2 = inlined_call_operand.vmem [shape: f32[1,128], index: 2, kind: input, shape index: {}, may-alias: {2,4}]
  %s3 = inlined_call_operand.vmem [shape: f32[1,128], index: 3, kind: input, shape index: {}]
  %s4 = inlined_call_operand.vmem [shape: f32[1,128], index: 4, kind: input, shape index: {}, may-alias: {2,4}]
  %s5 = inlined_call_operand.vmem [shape: bf16[128,128], index: 5, kind: input, shape index: {}]
  %s6 = inlined_call_operand.hbm [shape: f32[8,128], index: 6, kind: output, shape index: {}]
  %s7 = sld [smem:[#allocation0]]
  $region34: #{clip_forward.3} parent=0
    _
  %s9 = ssub.s32 1, %s7
  %s10 = scalar_select 0, %s9, %s7
  $region1: #{clip_forward.3} parent=0
    #allocation2 [shape = 'u8[4096]{0}', space=vmem, size = 0x1000, scoped, tag = 'output window, operand 0, single buffered']
    #allocation3 [shape = 's32[1]{0}', space=sflag, size = 0x4, scoped, tag = 'scoped memory for clip_forward.3']
    %11 = vsyncpa [#allocation3], 0
    // Predicated region
    $region2: #{clip_forward.3} parent=1 // pred_check
      _
    $region3: #{clip_forward.3} parent=1 // pred_check_branch
      %13 = sbr.rel (0) target = $region5
    $region4: #{clip_forward.3} parent=1 // pred_region
      _
    $region5: #{clip_forward.3} parent=1 // pred_fallthru
      _
    // Predicated region
    $region6: #{clip_forward.3} parent=1 // pred_check
      _
    $region7: #{clip_forward.3} parent=1 // pred_check_branch
      %15 = sbr.rel (0) target = $region9
    $region8: #{clip_forward.3} parent=1 // pred_region
      _
    $region9: #{clip_forward.3} parent=1 // pred_fallthru
      _
    // Predicated region
    $region10: #{clip_forward.3} parent=1 // pred_check
      _
    $region11: #{clip_forward.3} parent=1 // pred_check_branch
      %17 = sbr.rel (0) target = $region13
    $region12: #{clip_forward.3} parent=1 // pred_region
      _
    $region13: #{clip_forward.3} parent=1 // pred_fallthru
      _
    // Predicated region
    $region14: #{clip_forward.3} parent=1 // pred_check
      _
    $region15: #{clip_forward.3} parent=1 // pred_check_branch
      %19 = sbr.rel (0) target = $region17
    $region16: #{clip_forward.3} parent=1 // pred_region
      _
    $region17: #{clip_forward.3} parent=1 // pred_fallthru
      _
    // Predicated region
    $region18: #{clip_forward.3} parent=1 // pred_check
      _
    $region19: #{clip_forward.3} parent=1 // pred_check_branch
      %21 = sbr.rel (0) target = $region21
    $region20: #{clip_forward.3} parent=1 // pred_region
      _
    $region21: #{clip_forward.3} parent=1 // pred_fallthru
      _
    // Predicated region
    $region22: #{clip_forward.3} parent=1 // pred_check
      _
    $region23: #{clip_forward.3} parent=1 // pred_check_branch
      %23 = sbr.rel (0) target = $region25
    $region24: #{clip_forward.3} parent=1 // pred_region
      _
    $region25: #{clip_forward.3} parent=1 // pred_fallthru
      _
    %v25 = vld [vmem:[%s0] sm:$0xff]
    %v26 = vld [vmem:[%s1] sm:$0xf]
    %v27 = vld [vmem:[%s1 + $0x4] sm:$0xf]
    %v28 = vld [vmem:[%s1 + $0x8] sm:$0xf]
    %v29 = vld [vmem:[%s1 + $0xc] sm:$0xf]
    %v30 = vld [vmem:[%s1 + $0x10] sm:$0xf]
    %v31 = vld [vmem:[%s1 + $0x14] sm:$0xf]
    %v32 = vld [vmem:[%s1 + $0x18] sm:$0xf]
    %v33 = vld [vmem:[%s1 + $0x1c] sm:$0xf]
    %v34 = vld [vmem:[%s1 + $0x20] sm:$0xf]
    %v35 = vld [vmem:[%s1 + $0x24] sm:$0xf]
    %v36 = vld [vmem:[%s1 + $0x28] sm:$0xf]
    %v37 = vld [vmem:[%s1 + $0x2c] sm:$0xf]
    %v38 = vld [vmem:[%s1 + $0x30] sm:$0xf]
    %v39 = vld [vmem:[%s1 + $0x34] sm:$0xf]
    %v40 = vld [vmem:[%s1 + $0x38] sm:$0xf]
    %v41 = vld [vmem:[%s1 + $0x3c] sm:$0xf]
    %v42 = vld [vmem:[%s1 + $0x40] sm:$0xf]
    %v43 = vld [vmem:[%s1 + $0x44] sm:$0xf]
    %v44 = vld [vmem:[%s1 + $0x48] sm:$0xf]
    %v45 = vld [vmem:[%s1 + $0x4c] sm:$0xf]
    %v46 = vld [vmem:[%s1 + $0x50] sm:$0xf]
    %v47 = vld [vmem:[%s1 + $0x54] sm:$0xf]
    %v48 = vld [vmem:[%s1 + $0x58] sm:$0xf]
    %v49 = vld [vmem:[%s1 + $0x5c] sm:$0xf]
    %v50 = vld [vmem:[%s2] sm:$0x1]
    %v52 = vlaneseq
    %v53 = vshrl.u32 %v52, 7
    %v54 = vsub.s32 0, %v53
    %v55 = vrot.slane %v50, %v54
    %v58 = vunpack.c.l.b16 %v25
    %v59 = vunpack.c.h.b16 %v25
    %v60 = vpack.c.b16 %v58, %v58
    %v61 = vpack.c.b16 %v59, %v59
    %v87 = vunpack.c.l.b16 %v26
    %v88 = vunpack.c.l.b16 %v27
    %v89 = vunpack.c.l.b16 %v28
    %v90 = vunpack.c.l.b16 %v29
    %v91 = vunpack.c.l.b16 %v30
    %v92 = vunpack.c.l.b16 %v31
    %v93 = vunpack.c.l.b16 %v32
    %v94 = vunpack.c.l.b16 %v33
    %v95 = vunpack.c.l.b16 %v34
    %v96 = vunpack.c.l.b16 %v35
    %v97 = vunpack.c.l.b16 %v36
    %v98 = vunpack.c.l.b16 %v37
    %v99 = vunpack.c.l.b16 %v38
    %v100 = vunpack.c.l.b16 %v39
    %v101 = vunpack.c.l.b16 %v40
    %v102 = vunpack.c.l.b16 %v41
    %v103 = vunpack.c.l.b16 %v42
    %v104 = vunpack.c.l.b16 %v43
    %v105 = vunpack.c.l.b16 %v44
    %v106 = vunpack.c.l.b16 %v45
    %v107 = vunpack.c.l.b16 %v46
    %v108 = vunpack.c.l.b16 %v47
    %v109 = vunpack.c.l.b16 %v48
    %v110 = vunpack.c.l.b16 %v49
    %v111 = vpack.c.b16 %v88, %v87
    %v112 = vpack.c.b16 %v90, %v89
    %v113 = vpack.c.b16 %v92, %v91
    %v114 = vpack.c.b16 %v94, %v93
    %v115 = vpack.c.b16 %v96, %v95
    %v116 = vpack.c.b16 %v98, %v97
    %v117 = vpack.c.b16 %v100, %v99
    %v118 = vpack.c.b16 %v102, %v101
    %v119 = vpack.c.b16 %v104, %v103
    %v120 = vpack.c.b16 %v106, %v105
    %v121 = vpack.c.b16 %v108, %v107
    %v122 = vpack.c.b16 %v110, %v109
    %vm135 = vcmask 523264
    %v137 = vsel %vm135, %v61, 0
    %139 = vmatprep.subr.bf16.mxu0 0
    %140 = vmatpush1.bf16.msra.mxu0 %v111
    %141 = vmatprep.subr.bf16.mxu0 0
    %142 = vmatpush1.bf16.msra.mxu0 %v112
    %143 = vmatprep.subr.bf16.mxu0 0
    %144 = vmatpush1.bf16.msra.mxu0 %v113
    %145 = vmatprep.subr.bf16.mxu0 0
    %146 = vmatpush1.bf16.msra.mxu0 %v114
    %147 = vmatprep.subr.bf16.mxu0 0
    %148 = vmatpush1.bf16.msra.mxu0 %v115
    %149 = vmatprep.subr.bf16.mxu0 0
    %150 = vmatpush1.bf16.msra.mxu0 %v116
    %151 = vmatprep.subr.bf16.mxu0 0
    %152 = vmatpush1.bf16.msra.mxu0 %v117
    %153 = vmatprep.subr.bf16.mxu0 0
    %154 = vmatpush1.bf16.msra.mxu0 %v118
    %155 = vmatprep.subr.bf16.mxu0 0
    %156 = vmatpush1.bf16.msra.mxu0 %v119
    %157 = vmatprep.subr.bf16.mxu0 0
    %158 = vmatpush1.bf16.msra.mxu0 %v120
    %159 = vmatprep.subr.bf16.mxu0 0
    %160 = vmatpush1.bf16.msra.mxu0 %v121
    %161 = vmatprep.subr.bf16.mxu0 0
    %162 = vmatpush1.bf16.msra.mxu0 %v122
    %163 = vmatprep.subr.bf16.mxu0 0
    %164 = vmatpush1.bf16.msra.mxu0 0
    %165 = vmatprep.subr.bf16.mxu0 0
    %166 = vmatpush1.bf16.msra.mxu0 0
    %167 = vmatprep.subr.bf16.mxu0 0
    %168 = vmatpush1.bf16.msra.mxu0 0
    %169 = vmatprep.subr.bf16.mxu0 0
    %170 = vmatpush1.bf16.msra.mxu0 0
    %171 = vmatprep.mubr.bf16.mxu0 %v137
    %172 = vmatmul.mubr.bf16.gmra.mrb[0].mxu0 %v60
    %v173 = vpop.f32.mrb[0].mxu0
    %v174 = vadd.f32 %v55, %v173
    %v175 = vpop.f32.mrb[0].mxu0
    %v176 = vpop.f32.mrb[0].mxu0
    %v177 = vpop.f32.mrb[0].mxu0
    %178 = vdwg.mxu0
    %v179 = vmul.f32 %v174, 0.5
    %v180 = vmul.f32 %v174, 0.70710677
    %v181 = verf.f32.pop %v180
    %v182 = vadd.f32 %v181, 1.0
    %v183 = vmul.f32 %v179, %v182
    %184 = vadd.xlane.f32.xlu0 %v183
    %v185 = vpop.xlane.xlu0 %184
    %v186 = vmul.f32 %v185, 0.0078125
    %v187 = vsub.f32 %v183, %v186
    %v188 = vmul.f32 %v187, %v187
    %189 = vadd.xlane.f32.xlu0 %v188
    %v190 = vpop.xlane.xlu0 %189
    %v191 = vmul.f32 %v190, 0.0078125
    %v192 = vadd.f32 %v191, 1e-05
    %v193 = vrsqrt.pop %v192
    %v194 = vmul.f32 %v187, %v193
    %v195 = vld [vmem:[%s3] sm:$0x1]
    %v197 = vlaneseq
    %v198 = vshrl.u32 %v197, 7
    %v199 = vsub.s32 0, %v198
    %v200 = vrot.slane %v195, %v199
    %v202 = vmul.f32 %v194, %v200
    %v203 = vld [vmem:[%s4] sm:$0x1]
    %v205 = vlaneseq
    %v206 = vshrl.u32 %v205, 7
    %v207 = vsub.s32 0, %v206
    %v208 = vrot.slane %v203, %v207
    %v210 = vadd.f32 %v202, %v208
    %v211 = vmul.f32 %v210, %v210
    %212 = vadd.xlane.f32.xlu0 %v211
    %v213 = vpop.xlane.xlu0 %212
    %v214 = vmax.f32 %v213, 1e-24
    %v215 = vrsqrt.pop %v214
    %v216 = vmul.f32 %v210, %v215
    %v217 = vpack.c.bf16 %v216, %v216
    %v218 = vld [vmem:[%s5] sm:$0xf]
    %v219 = vld [vmem:[%s5 + $0x4] sm:$0xf]
    %v220 = vld [vmem:[%s5 + $0x8] sm:$0xf]
    %v221 = vld [vmem:[%s5 + $0xc] sm:$0xf]
    %v222 = vld [vmem:[%s5 + $0x10] sm:$0xf]
    %v223 = vld [vmem:[%s5 + $0x14] sm:$0xf]
    %v224 = vld [vmem:[%s5 + $0x18] sm:$0xf]
    %v225 = vld [vmem:[%s5 + $0x1c] sm:$0xf]
    %v226 = vld [vmem:[%s5 + $0x20] sm:$0xf]
    %v227 = vld [vmem:[%s5 + $0x24] sm:$0xf]
    %v228 = vld [vmem:[%s5 + $0x28] sm:$0xf]
    %v229 = vld [vmem:[%s5 + $0x2c] sm:$0xf]
    %v230 = vld [vmem:[%s5 + $0x30] sm:$0xf]
    %v231 = vld [vmem:[%s5 + $0x34] sm:$0xf]
    %v232 = vld [vmem:[%s5 + $0x38] sm:$0xf]
    %v233 = vld [vmem:[%s5 + $0x3c] sm:$0xf]
    %v250 = vunpack.c.l.b16 %v218
    %v251 = vunpack.c.l.b16 %v219
    %v252 = vunpack.c.l.b16 %v220
    %v253 = vunpack.c.l.b16 %v221
    %v254 = vunpack.c.l.b16 %v222
    %v255 = vunpack.c.l.b16 %v223
    %v256 = vunpack.c.l.b16 %v224
    %v257 = vunpack.c.l.b16 %v225
    %v258 = vunpack.c.l.b16 %v226
    %v259 = vunpack.c.l.b16 %v227
    %v260 = vunpack.c.l.b16 %v228
    %v261 = vunpack.c.l.b16 %v229
    %v262 = vunpack.c.l.b16 %v230
    %v263 = vunpack.c.l.b16 %v231
    %v264 = vunpack.c.l.b16 %v232
    %v265 = vunpack.c.l.b16 %v233
    %v266 = vpack.c.b16 %v251, %v250
    %v267 = vpack.c.b16 %v253, %v252
    %v268 = vpack.c.b16 %v255, %v254
    %v269 = vpack.c.b16 %v257, %v256
    %v270 = vpack.c.b16 %v259, %v258
    %v271 = vpack.c.b16 %v261, %v260
    %v272 = vpack.c.b16 %v263, %v262
    %v273 = vpack.c.b16 %v265, %v264
    %282 = vmatprep.subr.bf16.mxu0 0
    %283 = vmatpush1.bf16.msra.mxu0 %v266
    %284 = vmatprep.subr.bf16.mxu0 0
    %285 = vmatpush1.bf16.msra.mxu0 %v267
    %286 = vmatprep.subr.bf16.mxu0 0
    %287 = vmatpush1.bf16.msra.mxu0 %v268
    %288 = vmatprep.subr.bf16.mxu0 0
    %289 = vmatpush1.bf16.msra.mxu0 %v269
    %290 = vmatprep.subr.bf16.mxu0 0
    %291 = vmatpush1.bf16.msra.mxu0 %v270
    %292 = vmatprep.subr.bf16.mxu0 0
    %293 = vmatpush1.bf16.msra.mxu0 %v271
    %294 = vmatprep.subr.bf16.mxu0 0
    %295 = vmatpush1.bf16.msra.mxu0 %v272
    %296 = vmatprep.subr.bf16.mxu0 0
    %297 = vmatpush1.bf16.msra.mxu0 %v273
    %298 = vmatprep.subr.bf16.mxu0 0
    %299 = vmatpush1.bf16.msra.mxu0 0
    %300 = vmatprep.subr.bf16.mxu0 0
    %301 = vmatpush1.bf16.msra.mxu0 0
    %302 = vmatprep.subr.bf16.mxu0 0
    %303 = vmatpush1.bf16.msra.mxu0 0
    %304 = vmatprep.subr.bf16.mxu0 0
    %305 = vmatpush1.bf16.msra.mxu0 0
    %306 = vmatprep.subr.bf16.mxu0 0
    %307 = vmatpush1.bf16.msra.mxu0 0
    %308 = vmatprep.subr.bf16.mxu0 0
    %309 = vmatpush1.bf16.msra.mxu0 0
    %310 = vmatprep.subr.bf16.mxu0 0
    %311 = vmatpush1.bf16.msra.mxu0 0
    %312 = vmatprep.subr.bf16.mxu0 0
    %313 = vmatpush1.bf16.msra.mxu0 0
    %314 = vmatprep.mubr.bf16.mxu0 0
    %315 = vmatmul.mubr.bf16.gmra.mrb[0].mxu0 %v217
    %v316 = vpop.f32.mrb[0].mxu0
    %v317 = vadd.f32 0.0, %v316
    %v318 = vpop.f32.mrb[0].mxu0
    %v319 = vpop.f32.mrb[0].mxu0
    %v320 = vpop.f32.mrb[0].mxu0
    %321 = vdwg.mxu0
    %322 = vst [vmem:[#allocation2] sm:$0xff] %v317
    // Predicated region
    $region26: #{clip_forward.3} parent=1 // pred_check
      _
    $region27: #{clip_forward.3} parent=1 // pred_check_branch
      %324 = sbr.rel (0) target = $region29
    $region28: #{clip_forward.3} parent=1 // pred_region
      %s326 = ssub.s32 128, 128
      %327 = vsyncadd [#allocation3], %s326
      %s329 = sshll.u32 [#allocation2], 4
      %s330 = int_to_ptr.vmem [resolvable:$true] %s329
      %332 = dma.vmem_to_hbm [thread:$0]  %s330, 128, %s6, [#allocation3]
    $region29: #{clip_forward.3} parent=1 // pred_fallthru
      _
    // Predicated region
    $region30: #{clip_forward.3} parent=1 // pred_check
      _
    $region31: #{clip_forward.3} parent=1 // pred_check_branch
      %334 = sbr.rel (0) target = $region33
    $region32: #{clip_forward.3} parent=1 // pred_region
      %335 = dma.done [#allocation3], 128
    $region33: #{clip_forward.3} parent=1 // pred_fallthru
      _
    %336 = vsyncpa [#allocation3], 1

</llo_original>
